<compile_context>
chip_gen: v7x
topology: tpu7x:2x2x1
jax: 0.10.0
libtpu: 0.0.40
codegen_flags: <defaults>
</compile_context>

<pallas_src>
import functools

import numpy as np
import jax
import jax.numpy as jnp
from jax.experimental import pallas as pl
from jax.experimental.pallas import tpu as pltpu


# ----------------------------- helpers ---------------------------------------
def _round_up(x, mult):
    return ((x + mult - 1) // mult) * mult


def _choose_tm(m, k, c_pad, oc_pad, *, max_tm=512, vmem_budget=20 * 1024 * 1024):
    """Pick the m-tile: as large as a conservative VMEM budget allows (fits the
    v7x 64 MiB / 32 MiB-scoped case), capped so the grid keeps a few steps."""
    weight_bytes = c_pad * oc_pad * 2 + oc_pad * 4            # resident weight (bf16) + bias row
    per_row = 2 * k * c_pad * 4 + 2 * oc_pad * 4              # dbl-buffered feats + dbl-buffered out
    tm = (vmem_budget - weight_bytes) // max(per_row, 1)
    tm = max(8, min(max_tm, (tm // 8) * 8))
    # keep >= ~4 grid steps when m allows (v7x has 2 TCs; "parallel" axis shards steps)
    tm = min(tm, max(8, _round_up(-(-m // 4), 8)))
    return min(tm, _round_up(m, 8))


# ----------------------------- Pallas kernel ---------------------------------
def _transition_down_kernel(x_ref, w_ref, b_ref, o_ref, *, k, c_real, eps):
    # x_ref: (tm*k, c_pad) grouped features (zero-padded lanes beyond c_real)
    x = x_ref[...].astype(jnp.float32)
    inv_c = 1.0 / c_real
    s1 = jnp.sum(x, axis=-1, keepdims=True)
    s2 = jnp.sum(x * x, axis=-1, keepdims=True)
    mean = s1 * inv_c
    var = s2 * inv_c - mean * mean                 # E[x^2] - mean^2, one pass
    xn = (x - mean) * jax.lax.rsqrt(var + eps)
    # padded lanes of xn are non-zero (-mean * rsqrt) but hit zero rows of W', so they
    # contribute nothing; gamma is already folded into W', beta into the bias row.

    # Linear (no bias) on the MXU: bf16 operands, f32 accumulation.
    y = jnp.dot(xn.astype(jnp.bfloat16), w_ref[...],
                preferred_element_type=jnp.float32)            # (tm*k, out_c_pad)

    rows, n = y.shape
    # MaxPool1d(k) over the neighbor axis on the small post-matmul tensor.
    y = jnp.max(y.reshape(rows // k, k, n), axis=1)            # (tm, out_c_pad)
    o_ref[...] = (y + b_ref[...]).astype(o_ref.dtype)


def transition_down_pallas(grouped_feats, gamma, beta, w, *, eps=1e-5, tm=None):
    """grouped_feats: (m, k, c); gamma/beta: (c,); w: (c, out_c) -> (m, out_c)."""
    m, k, c = grouped_feats.shape
    out_c = w.shape[1]
    c_pad = _round_up(c, 128)
    oc_pad = _round_up(out_c, 128)

    # Fold LayerNorm affine into the weight / a constant row bias (done once, O(c*out_c)).
    w32 = w.astype(jnp.float32)
    w_fold = gamma.astype(jnp.float32)[:, None] * w32                    # (c, out_c)
    b_row = (beta.astype(jnp.float32) @ w32).reshape(1, out_c)           # (1, out_c)
    w_fold = jnp.pad(w_fold, ((0, c_pad - c), (0, oc_pad - out_c))).astype(jnp.bfloat16)
    b_row = jnp.pad(b_row, ((0, 0), (0, oc_pad - out_c)))

    if tm is None:
        tm = _choose_tm(m, k, c_pad, oc_pad)
    m_pad = _round_up(m, tm)

    # 2-D, lane-dense layout for the kernel: (m*k, c_pad). The (m,k,c)->(m*k,c)
    # reshape is contiguous (free in HBM); channel pad lanes are zero.
    x2d = grouped_feats.reshape(m * k, c)
    x2d = jnp.pad(x2d, ((0, (m_pad - m) * k), (0, c_pad - c)))

    cost = pl.CostEstimate(
        flops=2 * m_pad * k * c_pad * oc_pad,
        transcendentals=0,
        bytes_accessed=m_pad * k * c_pad * 4 + m_pad * oc_pad * 4 + c_pad * oc_pad * 2,
    )

    out = pl.pallas_call(
        functools.partial(_transition_down_kernel, k=k, c_real=float(c), eps=eps),
        out_shape=jax.ShapeDtypeStruct((m_pad, oc_pad), grouped_feats.dtype),
        grid=(m_pad // tm,),
        in_specs=[
            # feats stream, tiled over m (rows i*tm*k .. (i+1)*tm*k)
            pl.BlockSpec((tm * k, c_pad), lambda i: (i, 0)),
            # grid-invariant folded weight (bf16) and bias row
            pl.BlockSpec((c_pad, oc_pad), lambda i: (0, 0)),
            pl.BlockSpec((1, oc_pad), lambda i: (0, 0)),
        ],
        out_specs=pl.BlockSpec((tm, oc_pad), lambda i: (i, 0)),   # lane-dense output
        compiler_params=pltpu.CompilerParams(
            dimension_semantics=("parallel",),
            vmem_limit_bytes=48 * 1024 * 1024),
        cost_estimate=cost,
        # If DMA shows as exposed for very large c*k tiles, switch the feats spec to
        # pipeline_mode=pl.Buffered(3).
    )(x2d, w_fold, b_row)
    return out[:m, :out_c]


# --------------------- host-side glue (data-dependent ops) -------------------
# TODO(synk): pointops.furthestsampling / queryandgroup are data-dependent
# sequential sampling + kNN gather; done in host NumPy glue, not in Pallas.
def compute_new_offset(offset, ratio):
    new_off = [int(offset[0] * ratio) + 1]
    count = int(offset[0] * ratio) + 1
    for i in range(1, len(offset)):
        count += (offset[i] - offset[i - 1]) * ratio + 1
        new_off.append(count)
    return np.asarray(new_off, dtype=np.int32)  # truncation matches IntTensor


def furthest_point_sampling(coords, offset, new_offset):
    idx_all = []
    start, ns_prev = 0, 0
    for b in range(len(offset)):
        end = int(offset[b])
        nsample = int(new_offset[b]) - ns_prev
        pts = coords[start:end]
        n = pts.shape[0]
        sel = np.zeros(nsample, dtype=np.int64)
        dist = np.full(n, np.inf, dtype=np.float64)
        cur = 0
        for j in range(nsample):
            sel[j] = cur
            d = np.sum((pts - pts[cur]) ** 2, axis=1)
            dist = np.minimum(dist, d)
            cur = int(np.argmax(dist))
        idx_all.append(sel + start)
        start, ns_prev = end, int(new_offset[b])
    return np.concatenate(idx_all)


def knn_query_and_group(k, coords, new_coords, feats, offset, new_offset):
    groups = []
    start, ns_start = 0, 0
    for b in range(len(offset)):
        end, ns_end = int(offset[b]), int(new_offset[b])
        pts = coords[start:end]
        q = new_coords[ns_start:ns_end]
        d = np.sum((q[:, None, :] - pts[None, :, :]) ** 2, axis=-1)
        nn = np.argsort(d, axis=1)[:, :k]
        if nn.shape[1] < k:  # fewer than k points: repeat nearest
            nn = np.concatenate(
                [nn, np.repeat(nn[:, :1], k - nn.shape[1], axis=1)], axis=1)
        groups.append(feats[start:end][nn])  # (m_b, k, c)
        start, ns_start = end, ns_end
    return np.concatenate(groups, axis=0)


# ------------------------------------ main ------------------------------------
if __name__ == "__main__":
    key = jax.random.PRNGKey(0)
    k_coords, k_feats, k_w = jax.random.split(key, 3)

    # small synthetic point cloud: batch of 2 segments, 8 points each
    N, in_c, out_c = 16, 16, 32
    ratio, k_nn = 0.25, 4

    coords = jax.random.normal(k_coords, (N, 3), dtype=jnp.float32)
    feats = jax.random.normal(k_feats, (N, in_c), dtype=jnp.float32)
    offset = np.array([8, 16], dtype=np.int32)

    # deterministic parameters (module __init__ shapes)
    gamma = jnp.ones((in_c,), jnp.float32)            # LayerNorm weight
    beta = jnp.zeros((in_c,), jnp.float32)            # LayerNorm bias
    w = jax.random.normal(k_w, (in_c, out_c), jnp.float32) * 0.05  # Linear (no bias)

    coords_np = np.asarray(coords)
    feats_np = np.asarray(feats)

    new_offset = compute_new_offset(offset, ratio)
    idx = furthest_point_sampling(coords_np, offset, new_offset)
    new_coords = coords_np[idx]
    grouped = knn_query_and_group(k_nn, coords_np, new_coords, feats_np,
                                  offset, new_offset)          # (m, k, c)

    out = transition_down_pallas(jnp.asarray(grouped), gamma, beta, w)
    out = jax.block_until_ready(out)

    # numerical check vs pure NumPy reference of LayerNorm -> Linear -> max over k
    x64 = grouped.astype(np.float64)
    mean = x64.mean(-1, keepdims=True)
    var = x64.var(-1, keepdims=True)
    xn = (x64 - mean) / np.sqrt(var + 1e-5)
    xn = xn * np.asarray(gamma) + np.asarray(beta)
    ref = (xn @ np.asarray(w).astype(np.float64)).max(axis=1)
    # bf16 MXU operands -> looser tolerance than a pure-f32 path
    np.testing.assert_allclose(np.asarray(out), ref, rtol=2e-2, atol=2e-2)

    assert out.shape == (new_offset[-1], out_c)
    assert new_coords.shape == (new_offset[-1], 3)

    print("KERNEL_OK")
</pallas_src>

<mosaic_0001>
module attributes {stable_mosaic.version = 11 : i64} {
  func.func @_transition_down_kernel(%arg0: i32, %arg1: memref<32x128xf32, #tpu.memory_space<vmem>>, %arg2: memref<128x128xbf16, #tpu.memory_space<vmem>>, %arg3: memref<1x128xf32, #tpu.memory_space<vmem>>, %arg4: memref<8x128xf32, #tpu.memory_space<vmem>>) attributes {dimension_semantics = [#tpu.dimension_semantics<parallel>], iteration_bounds = array<i64: 1>, scalar_prefetch = 0 : i64, scratch_operands = 0 : i64, tpu.core_type = #tpu.core_type<tc>, window_params = [{transform_indices = @transform_0, window_bounds = array<i64: 32, 128>}, {pipeline_mode = #tpu.pipeline_mode<synchronous>, transform_indices = @transform_1, window_bounds = array<i64: 128, 128>}, {pipeline_mode = #tpu.pipeline_mode<synchronous>, transform_indices = @transform_2, window_bounds = array<i64: 1, 128>}, {transform_indices = @transform_3, window_bounds = array<i64: 8, 128>}]} {
    %c0 = arith.constant 0 : index
    %c0_0 = arith.constant 0 : index
    %0 = vector.load %arg1[%c0, %c0_0] : memref<32x128xf32, #tpu.memory_space<vmem>>, vector<32x128xf32>
    %cst = arith.constant dense<0.000000e+00> : vector<32xf32>
    %1 = vector.multi_reduction <add>, %0, %cst [1] : vector<32x128xf32> to vector<32xf32>
    %2 = vector.shape_cast %1 : vector<32xf32> to vector<32x1xf32>
    %3 = arith.mulf %0, %0 : vector<32x128xf32>
    %cst_1 = arith.constant dense<0.000000e+00> : vector<32xf32>
    %4 = vector.multi_reduction <add>, %3, %cst_1 [1] : vector<32x128xf32> to vector<32xf32>
    %5 = vector.shape_cast %4 : vector<32xf32> to vector<32x1xf32>
    %cst_2 = arith.constant 6.250000e-02 : f32
    %6 = vector.broadcast %cst_2 : f32 to vector<32x1xf32>
    %7 = arith.mulf %2, %6 : vector<32x1xf32>
    %cst_3 = arith.constant 6.250000e-02 : f32
    %8 = vector.broadcast %cst_3 : f32 to vector<32x1xf32>
    %9 = arith.mulf %5, %8 : vector<32x1xf32>
    %10 = arith.mulf %7, %7 : vector<32x1xf32>
    %11 = arith.subf %9, %10 : vector<32x1xf32>
    %12 = vector.broadcast %7 : vector<32x1xf32> to vector<32x128xf32>
    %13 = arith.subf %0, %12 : vector<32x128xf32>
    %cst_4 = arith.constant 9.99999974E-6 : f32
    %14 = vector.broadcast %cst_4 : f32 to vector<32x1xf32>
    %15 = arith.addf %11, %14 : vector<32x1xf32>
    %16 = math.rsqrt %15 : vector<32x1xf32>
    %17 = vector.broadcast %16 : vector<32x1xf32> to vector<32x128xf32>
    %18 = arith.mulf %13, %17 : vector<32x128xf32>
    %19 = arith.truncf %18 : vector<32x128xf32> to vector<32x128xbf16>
    %c0_5 = arith.constant 0 : index
    %c0_6 = arith.constant 0 : index
    %20 = vector.load %arg2[%c0_5, %c0_6] : memref<128x128xbf16, #tpu.memory_space<vmem>>, vector<128x128xbf16>
    %cst_7 = arith.constant dense<0.000000e+00> : vector<32x128xf32>
    %21 = tpu.matmul %19, %20, %cst_7 {dimension_numbers = #tpu.dot_dimension_numbers<[1], [0], [0], [1], [0, 0, 1, 1], [], []>} : vector<32x128xbf16>, vector<128x128xbf16>, vector<32x128xf32> -> vector<32x128xf32>
    %22 = vector.shape_cast %21 : vector<32x128xf32> to vector<8x4x128xf32>
    %cst_8 = arith.constant dense<0xFF800000> : vector<8x128xf32>
    %23 = vector.multi_reduction <maximumf>, %22, %cst_8 [1] : vector<8x4x128xf32> to vector<8x128xf32>
    %c0_9 = arith.constant 0 : index
    %c0_10 = arith.constant 0 : index
    %24 = vector.load %arg3[%c0_9, %c0_10] : memref<1x128xf32, #tpu.memory_space<vmem>>, vector<1x128xf32>
    %25 = vector.broadcast %24 : vector<1x128xf32> to vector<8x128xf32>
    %26 = arith.addf %23, %25 : vector<8x128xf32>
    %c0_11 = arith.constant 0 : index
    %c0_12 = arith.constant 0 : index
    %27 = vector.load %arg4[%c0_11, %c0_12] : memref<8x128xf32, #tpu.memory_space<vmem>>, vector<8x128xf32>
    tpu.vector_store %arg4[%c0_11, %c0_12], %26 {strides = array<i32>} : memref<8x128xf32, #tpu.memory_space<vmem>>, vector<8x128xf32>,
    return
  }
  func.func @transform_0(%arg0: i32) -> (i32, i32) {
    %c0_i32 = arith.constant 0 : i32
    %c0_i32_0 = arith.constant 0 : i32
    return %arg0, %c0_i32 : i32, i32
  }
  func.func @transform_1(%arg0: i32) -> (i32, i32) {
    %c0_i32 = arith.constant 0 : i32
    %c0_i32_0 = arith.constant 0 : i32
    %c0_i32_1 = arith.constant 0 : i32
    return %c0_i32, %c0_i32_0 : i32, i32
  }
  func.func @transform_2(%arg0: i32) -> (i32, i32) {
    %c0_i32 = arith.constant 0 : i32
    %c0_i32_0 = arith.constant 0 : i32
    %c0_i32_1 = arith.constant 0 : i32
    return %c0_i32, %c0_i32_0 : i32, i32
  }
  func.func @transform_3(%arg0: i32) -> (i32, i32) {
    %c0_i32 = arith.constant 0 : i32
    %c0_i32_0 = arith.constant 0 : i32
    return %arg0, %c0_i32 : i32, i32
  }
}

</mosaic_0001>

<llo_original>
// kernel: tpu_custom_call.1
$region0: #{tpu_custom_call.1}
  #allocation0 [shape = 'u32[]', space=smem, size = 0x4, offset = 0x4, fixed_abs, tag = 'smem constant byte address 0x4 - core index']
  #allocation1 [shape = 'u32[144,128]{1,0:T(1,128)}', space=vmem, size = 0x12000, scoped, tag = 'internal scratch']
  %s0 = inlined_call_operand.hbm [shape: f32[32,128], index: 0, kind: input, shape index: {}]
  %s1 = inlined_call_operand.hbm [shape: bf16[128,128], index: 1, kind: input, shape index: {}]
  %s2 = inlined_call_operand.vmem [shape: f32[1,128], index: 2, kind: input, shape index: {}]
  %s3 = inlined_call_operand.hbm [shape: f32[8,128], index: 3, kind: output, shape index: {}]
  %s4 = sld [smem:[#allocation0]]
  $region30: #{tpu_custom_call.1} parent=0
    _
  %s6 = ssub.s32 1, %s4
  %s7 = scalar_select 0, %s6, %s4
  $region1: #{tpu_custom_call.1} parent=0
    #allocation2 [shape = 'u8[16384]{0}', space=vmem, size = 0x4000, scoped, tag = 'input window, operand 0, single buffered']
    #allocation3 [shape = 's32[1]{0}', space=sflag, size = 0x4, scoped, tag = 'scoped memory for tpu_custom_call.1']
    #allocation4 [shape = 's32[1]{0}', space=sflag, size = 0x4, scoped, tag = 'scoped memory for tpu_custom_call.1']
    #allocation5 [shape = 'u8[32768]{0}', space=vmem, size = 0x8000, scoped, tag = 'input window, operand 1, single buffered']
    #allocation6 [shape = 's32[1]{0}', space=sflag, size = 0x4, scoped, tag = 'scoped memory for tpu_custom_call.1']
    #allocation7 [shape = 'u8[4096]{0}', space=vmem, size = 0x1000, scoped, tag = 'output window, operand 0, single buffered']
    %8 = vsyncpa [#allocation3], 0
    %9 = vsyncpa [#allocation6], 0
    %10 = vsyncpa [#allocation4], 0
    // Predicated region
    $region2: #{tpu_custom_call.1} parent=1 // pred_check
      _
    $region3: #{tpu_custom_call.1} parent=1 // pred_check_branch
      %12 = sbr.rel (0) target = $region5
    $region4: #{tpu_custom_call.1} parent=1 // pred_region
      %s14 = ssub.s32 512, 512
      %15 = vsyncadd [#allocation3], %s14
      %s16 = sshll.u32 [#allocation2], 4
      %s17 = int_to_ptr.vmem [resolvable:$true] %s16
      %22 = dma.hbm_to_vmem [thread:$0]  %s0, 512, %s17, [#allocation3], 128, 128, 8
    $region5: #{tpu_custom_call.1} parent=1 // pred_fallthru
      _
    // Predicated region
    $region6: #{tpu_custom_call.1} parent=1 // pred_check
      _
    $region7: #{tpu_custom_call.1} parent=1 // pred_check_branch
      %24 = sbr.rel (0) target = $region9
    $region8: #{tpu_custom_call.1} parent=1 // pred_region
      %s26 = ssub.s32 1024, 1024
      %27 = vsyncadd [#allocation6], %s26
      %s28 = sshll.u32 [#allocation5], 4
      %s29 = int_to_ptr.vmem [resolvable:$true] %s28
      %34 = dma.hbm_to_vmem [thread:$0]  %s1, 1024, %s29, [#allocation6], 64, 64, 4
    $region9: #{tpu_custom_call.1} parent=1 // pred_fallthru
      _
    // Predicated region
    $region10: #{tpu_custom_call.1} parent=1 // pred_check
      _
    $region11: #{tpu_custom_call.1} parent=1 // pred_check_branch
      %36 = sbr.rel (0) target = $region13
    $region12: #{tpu_custom_call.1} parent=1 // pred_region
      _
    $region13: #{tpu_custom_call.1} parent=1 // pred_fallthru
      _
    // Predicated region
    $region14: #{tpu_custom_call.1} parent=1 // pred_check
      _
    $region15: #{tpu_custom_call.1} parent=1 // pred_check_branch
      %38 = sbr.rel (0) target = $region17
    $region16: #{tpu_custom_call.1} parent=1 // pred_region
      %39 = dma.done [#allocation3], 512
    $region17: #{tpu_custom_call.1} parent=1 // pred_fallthru
      _
    // Predicated region
    $region18: #{tpu_custom_call.1} parent=1 // pred_check
      _
    $region19: #{tpu_custom_call.1} parent=1 // pred_check_branch
      %41 = sbr.rel (0) target = $region21
    $region20: #{tpu_custom_call.1} parent=1 // pred_region
      %42 = dma.done [#allocation6], 1024
    $region21: #{tpu_custom_call.1} parent=1 // pred_fallthru
      _
    %v44 = vld [vmem:[#allocation2] sm:$0xff]
    %v45 = vld [vmem:[#allocation2 + $0x8] sm:$0xff]
    %v46 = vld [vmem:[#allocation2 + $0x10] sm:$0xff]
    %v47 = vld [vmem:[#allocation2 + $0x18] sm:$0xff]
    %48 = vadd.xlane.f32.xlu0 %v44
    %v49 = vpop.xlane.xlu0 %48
    %50 = vadd.xlane.f32.xlu0 %v45
    %v51 = vpop.xlane.xlu0 %50
    %52 = vadd.xlane.f32.xlu0 %v46
    %v53 = vpop.xlane.xlu0 %52
    %54 = vadd.xlane.f32.xlu0 %v47
    %v55 = vpop.xlane.xlu0 %54
    %v56 = vmul.f32 %v44, %v44
    %v57 = vmul.f32 %v45, %v45
    %v58 = vmul.f32 %v46, %v46
    %v59 = vmul.f32 %v47, %v47
    %60 = vadd.xlane.f32.xlu0 %v56
    %v61 = vpop.xlane.xlu0 %60
    %62 = vadd.xlane.f32.xlu0 %v57
    %v63 = vpop.xlane.xlu0 %62
    %64 = vadd.xlane.f32.xlu0 %v58
    %v65 = vpop.xlane.xlu0 %64
    %66 = vadd.xlane.f32.xlu0 %v59
    %v67 = vpop.xlane.xlu0 %66
    %v68 = vmul.f32 %v49, 0.0625
    %v69 = vmul.f32 %v51, 0.0625
    %v70 = vmul.f32 %v53, 0.0625
    %v71 = vmul.f32 %v55, 0.0625
    %v72 = vmul.f32 %v61, 0.0625
    %v73 = vmul.f32 %v63, 0.0625
    %v74 = vmul.f32 %v65, 0.0625
    %v75 = vmul.f32 %v67, 0.0625
    %v76 = vmul.f32 %v68, %v68
    %v77 = vmul.f32 %v69, %v69
    %v78 = vmul.f32 %v70, %v70
    %v79 = vmul.f32 %v71, %v71
    %v80 = vsub.f32 %v72, %v76
    %v81 = vsub.f32 %v73, %v77
    %v82 = vsub.f32 %v74, %v78
    %v83 = vsub.f32 %v75, %v79
    %v84 = vsub.f32 %v44, %v68
    %v85 = vsub.f32 %v45, %v69
    %v86 = vsub.f32 %v46, %v70
    %v87 = vsub.f32 %v47, %v71
    %v88 = vadd.f32 %v80, 1e-05
    %v89 = vadd.f32 %v81, 1e-05
    %v90 = vadd.f32 %v82, 1e-05
    %v91 = vadd.f32 %v83, 1e-05
    %v92 = vrsqrt.pop %v88
    %v93 = vrsqrt.pop %v89
    %v94 = vrsqrt.pop %v90
    %v95 = vrsqrt.pop %v91
    %v96 = vmul.f32 %v84, %v92
    %v97 = vmul.f32 %v85, %v93
    %v98 = vmul.f32 %v86, %v94
    %v99 = vmul.f32 %v87, %v95
    %v100 = vpack.c.bf16 %v97, %v96
    %v101 = vpack.c.bf16 %v99, %v98
    %v102 = vld [vmem:[#allocation5] sm:$0xf]
    %v103 = vld [vmem:[#allocation5 + $0x4] sm:$0xf]
    %v104 = vld [vmem:[#allocation5 + $0x8] sm:$0xf]
    %v105 = vld [vmem:[#allocation5 + $0xc] sm:$0xf]
    %v106 = vld [vmem:[#allocation5 + $0x10] sm:$0xf]
    %v107 = vld [vmem:[#allocation5 + $0x14] sm:$0xf]
    %v108 = vld [vmem:[#allocation5 + $0x18] sm:$0xf]
    %v109 = vld [vmem:[#allocation5 + $0x1c] sm:$0xf]
    %v110 = vld [vmem:[#allocation5 + $0x20] sm:$0xf]
    %v111 = vld [vmem:[#allocation5 + $0x24] sm:$0xf]
    %v112 = vld [vmem:[#allocation5 + $0x28] sm:$0xf]
    %v113 = vld [vmem:[#allocation5 + $0x2c] sm:$0xf]
    %v114 = vld [vmem:[#allocation5 + $0x30] sm:$0xf]
    %v115 = vld [vmem:[#allocation5 + $0x34] sm:$0xf]
    %v116 = vld [vmem:[#allocation5 + $0x38] sm:$0xf]
    %v117 = vld [vmem:[#allocation5 + $0x3c] sm:$0xf]
    %v134 = vunpack.c.l.b16 %v102
    %v135 = vunpack.c.l.b16 %v103
    %v136 = vunpack.c.l.b16 %v104
    %v137 = vunpack.c.l.b16 %v105
    %v138 = vunpack.c.l.b16 %v106
    %v139 = vunpack.c.l.b16 %v107
    %v140 = vunpack.c.l.b16 %v108
    %v141 = vunpack.c.l.b16 %v109
    %v142 = vunpack.c.l.b16 %v110
    %v143 = vunpack.c.l.b16 %v111
    %v144 = vunpack.c.l.b16 %v112
    %v145 = vunpack.c.l.b16 %v113
    %v146 = vunpack.c.l.b16 %v114
    %v147 = vunpack.c.l.b16 %v115
    %v148 = vunpack.c.l.b16 %v116
    %v149 = vunpack.c.l.b16 %v117
    %v150 = vpack.c.b16 %v135, %v134
    %v151 = vpack.c.b16 %v137, %v136
    %v152 = vpack.c.b16 %v139, %v138
    %v153 = vpack.c.b16 %v141, %v140
    %v154 = vpack.c.b16 %v143, %v142
    %v155 = vpack.c.b16 %v145, %v144
    %v156 = vpack.c.b16 %v147, %v146
    %v157 = vpack.c.b16 %v149, %v148
    %166 = vmatprep.subr.bf16.mxu0 0
    %167 = vmatpush1.bf16.msra.mxu0 %v150
    %168 = vmatprep.subr.bf16.mxu0 0
    %169 = vmatpush1.bf16.msra.mxu0 %v151
    %170 = vmatprep.subr.bf16.mxu0 0
    %171 = vmatpush1.bf16.msra.mxu0 %v152
    %172 = vmatprep.subr.bf16.mxu0 0
    %173 = vmatpush1.bf16.msra.mxu0 %v153
    %174 = vmatprep.subr.bf16.mxu0 0
    %175 = vmatpush1.bf16.msra.mxu0 %v154
    %176 = vmatprep.subr.bf16.mxu0 0
    %177 = vmatpush1.bf16.msra.mxu0 %v155
    %178 = vmatprep.subr.bf16.mxu0 0
    %179 = vmatpush1.bf16.msra.mxu0 %v156
    %180 = vmatprep.subr.bf16.mxu0 0
    %181 = vmatpush1.bf16.msra.mxu0 %v157
    %182 = vmatprep.subr.bf16.mxu0 0
    %183 = vmatpush1.bf16.msra.mxu0 0
    %184 = vmatprep.subr.bf16.mxu0 0
    %185 = vmatpush1.bf16.msra.mxu0 0
    %186 = vmatprep.subr.bf16.mxu0 0
    %187 = vmatpush1.bf16.msra.mxu0 0
    %188 = vmatprep.subr.bf16.mxu0 0
    %189 = vmatpush1.bf16.msra.mxu0 0
    %190 = vmatprep.subr.bf16.mxu0 0
    %191 = vmatpush1.bf16.msra.mxu0 0
    %192 = vmatprep.subr.bf16.mxu0 0
    %193 = vmatpush1.bf16.msra.mxu0 0
    %194 = vmatprep.subr.bf16.mxu0 0
    %195 = vmatpush1.bf16.msra.mxu0 0
    %196 = vmatprep.subr.bf16.mxu0 0
    %197 = vmatpush1.bf16.msra.mxu0 0
    %198 = vmatprep.mubr.bf16.mxu0 0
    %199 = vmatmul.mubr.bf16.gmra.mrb[0].mxu0 %v100
    %v200 = vpop.f32.mrb[0].mxu0
    %v201 = vadd.f32 0.0, %v200
    %v202 = vpop.f32.mrb[0].mxu0
    %v203 = vpop.f32.mrb[0].mxu0
    %v204 = vadd.f32 0.0, %v203
    %v205 = vpop.f32.mrb[0].mxu0
    %206 = vmatprep.mubr.bf16.mxu0 0
    %207 = vmatmul.mubr.bf16.gmra.mrb[0].mxu0 %v101
    %v208 = vpop.f32.mrb[0].mxu0
    %v209 = vadd.f32 0.0, %v208
    %v210 = vpop.f32.mrb[0].mxu0
    %v211 = vpop.f32.mrb[0].mxu0
    %v212 = vadd.f32 0.0, %v211
    %v213 = vpop.f32.mrb[0].mxu0
    %214 = vdwg.mxu0
    %v219 = vcombine.high %v201, %v201
    %v220 = vcombine.high %v204, %v204
    %v221 = vcombine.high %v209, %v209
    %v222 = vcombine.high %v212, %v212
    %vm227 = vcmask 1043456
    %v228 = vsel %vm227, %v201, -inf
    %v229 = vrot.slane %v228, 4
    %v230 = vmax.f32 %v228, %v229
    %v231 = vrot.slane %v230, 2
    %v232 = vmax.f32 %v230, %v231
    %v233 = vrot.slane %v232, 1
    %v234 = vmax.f32 %v232, %v233
    %v235 = vsel %vm227, %v219, -inf
    %v236 = vrot.slane %v235, 4
    %v237 = vmax.f32 %v235, %v236
    %v238 = vrot.slane %v237, 2
    %v239 = vmax.f32 %v237, %v238
    %v240 = vrot.slane %v239, 1
    %v241 = vmax.f32 %v239, %v240
    %v242 = vsel %vm227, %v204, -inf
    %v243 = vrot.slane %v242, 4
    %v244 = vmax.f32 %v242, %v243
    %v245 = vrot.slane %v244, 2
    %v246 = vmax.f32 %v244, %v245
    %v247 = vrot.slane %v246, 1
    %v248 = vmax.f32 %v246, %v247
    %v249 = vsel %vm227, %v220, -inf
    %v250 = vrot.slane %v249, 4
    %v251 = vmax.f32 %v249, %v250
    %v252 = vrot.slane %v251, 2
    %v253 = vmax.f32 %v251, %v252
    %v254 = vrot.slane %v253, 1
    %v255 = vmax.f32 %v253, %v254
    %v256 = vsel %vm227, %v209, -inf
    %v257 = vrot.slane %v256, 4
    %v258 = vmax.f32 %v256, %v257
    %v259 = vrot.slane %v258, 2
    %v260 = vmax.f32 %v258, %v259
    %v261 = vrot.slane %v260, 1
    %v262 = vmax.f32 %v260, %v261
    %v263 = vsel %vm227, %v221, -inf
    %v264 = vrot.slane %v263, 4
    %v265 = vmax.f32 %v263, %v264
    %v266 = vrot.slane %v265, 2
    %v267 = vmax.f32 %v265, %v266
    %v268 = vrot.slane %v267, 1
    %v269 = vmax.f32 %v267, %v268
    %v270 = vsel %vm227, %v212, -inf
    %v271 = vrot.slane %v270, 4
    %v272 = vmax.f32 %v270, %v271
    %v273 = vrot.slane %v272, 2
    %v274 = vmax.f32 %v272, %v273
    %v275 = vrot.slane %v274, 1
    %v276 = vmax.f32 %v274, %v275
    %v277 = vsel %vm227, %v222, -inf
    %v278 = vrot.slane %v277, 4
    %v279 = vmax.f32 %v277, %v278
    %v280 = vrot.slane %v279, 2
    %v281 = vmax.f32 %v279, %v280
    %v282 = vrot.slane %v281, 1
    %v283 = vmax.f32 %v281, %v282
    %v284 = vld [vmem:[%s2] sm:$0x1]
    %v286 = vlaneseq
    %v287 = vshrl.u32 %v286, 7
    %v288 = vsub.s32 0, %v287
    %v289 = vrot.slane %v284, %v288
    %v291 = vadd.f32 %v234, %v289
    %v292 = vadd.f32 %v241, %v289
    %v293 = vadd.f32 %v248, %v289
    %v294 = vadd.f32 %v255, %v289
    %v295 = vadd.f32 %v262, %v289
    %v296 = vadd.f32 %v269, %v289
    %v297 = vadd.f32 %v276, %v289
    %v298 = vadd.f32 %v283, %v289
    %v307 = vrot.slane %v292, 7
    %vm308 = vcmask 1041409
    %v309 = vsel %vm308, %v307, %v291
    %v310 = vrot.slane %v293, 6
    %vm311 = vcmask 1042434
    %v312 = vsel %vm311, %v310, %v309
    %v313 = vrot.slane %v294, 5
    %vm314 = vcmask 1043459
    %v315 = vsel %vm314, %v313, %v312
    %v316 = vrot.slane %v295, 4
    %vm317 = vcmask 1044484
    %v318 = vsel %vm317, %v316, %v315
    %v319 = vrot.slane %v296, 3
    %vm320 = vcmask 1045509
    %v321 = vsel %vm320, %v319, %v318
    %v322 = vrot.slane %v297, 2
    %vm323 = vcmask 1046534
    %v324 = vsel %vm323, %v322, %v321
    %v325 = vrot.slane %v298, 1
    %vm326 = vcmask 1047559
    %v327 = vsel %vm326, %v325, %v324
    %329 = vst [vmem:[#allocation7] sm:$0xff] %v327
    // Predicated region
    $region22: #{tpu_custom_call.1} parent=1 // pred_check
      _
    $region23: #{tpu_custom_call.1} parent=1 // pred_check_branch
      %331 = sbr.rel (0) target = $region25
    $region24: #{tpu_custom_call.1} parent=1 // pred_region
      %s333 = ssub.s32 128, 128
      %334 = vsyncadd [#allocation4], %s333
      %s336 = sshll.u32 [#allocation7], 4
      %s337 = int_to_ptr.vmem [resolvable:$true] %s336
      %339 = dma.vmem_to_hbm [thread:$0]  %s337, 128, %s3, [#allocation4]
    $region25: #{tpu_custom_call.1} parent=1 // pred_fallthru
      _
    // Predicated region
    $region26: #{tpu_custom_call.1} parent=1 // pred_check
      _
    $region27: #{tpu_custom_call.1} parent=1 // pred_check_branch
      %341 = sbr.rel (0) target = $region29
    $region28: #{tpu_custom_call.1} parent=1 // pred_region
      %342 = dma.done [#allocation4], 128
    $region29: #{tpu_custom_call.1} parent=1 // pred_fallthru
      _
    %343 = vsyncpa [#allocation3], 1
    %344 = vsyncpa [#allocation6], 1
    %345 = vsyncpa [#allocation4], 1

</llo_original>
